<compile_context>
chip_gen: v6e
topology: v6e:2x2x1
jax: 0.10.0
libtpu: 0.0.40
codegen_flags: <defaults>
</compile_context>

<pallas_src>
import functools

import jax
import jax.numpy as jnp
from jax.experimental import pallas as pl
from jax.experimental.pallas import tpu as pltpu


# ----------------------------- kernels ------------------------------------ #

def _featpool_nonoverlap_kernel(x_ref, w_ref, b_ref, o_ref, *, kernel_size):
    # x_ref: (1, T_in_tile, C) bf16   w_ref: (C, H) bf16   b_ref: (1, H) f32
    # o_ref: (1, H, T_out_tile) f32
    x = x_ref[0]                                                   # (T_in, C)
    y = jnp.dot(x, w_ref[...], preferred_element_type=jnp.float32)  # MXU, f32 acc
    y = jnp.maximum(y + b_ref[...], 0.0)                            # bias + relu (f32)
    t_in, h = y.shape
    t_out = t_in // kernel_size
    pooled = jnp.mean(y.reshape(t_out, kernel_size, h), axis=1)     # avg pool (VPU)
    o_ref[0] = pooled.T                                             # lane-dense PyTorch layout


def _featpool_overlap_kernel(x_ref, w_ref, b_ref, p_ref, o_ref):
    # General stride != kernel_size fallback: pooling as a small matmul.
    # x_ref: (1, T, C) f32   w_ref: (C, H) f32   b_ref: (1, H) f32
    # p_ref: (T_out, T) f32  o_ref: (1, H, T_out) f32
    y = jnp.dot(x_ref[0], w_ref[...], preferred_element_type=jnp.float32)
    y = jnp.maximum(y + b_ref[...], 0.0)
    pooled = jnp.dot(p_ref[...], y, preferred_element_type=jnp.float32)
    o_ref[0] = pooled.T


# ----------------------------- wrappers ------------------------------------ #

def _pick_t_out_tile(t_out, k, c, h, budget_bytes=12 << 20):
    """Largest T_out tile (full, or a 128-multiple divisor) under a VMEM budget."""
    def need(t):
        # double-buffered bf16 input block + f32 output block + f32 intermediates
        return 2 * (t * k * c * 2 + h * t * 4) + 2 * t * k * h * 4
    if need(t_out) <= budget_bytes:
        return t_out
    cand = (t_out // 128) * 128
    while cand >= 128:
        if t_out % cand == 0 and need(cand) <= budget_bytes:
            return cand
        cand -= 128
    return t_out  # no clean divisor: fall back to full blocks


def _feat_avg_pool_nonoverlap(x, w, b, k, t_out):
    B, T, C = x.shape
    H = w.shape[1]
    t_used = t_out * k                       # AvgPool1d drops the tail
    x_bf = x[:, :t_used, :].astype(jnp.bfloat16)
    w_bf = w.astype(jnp.bfloat16)

    t_out_blk = _pick_t_out_tile(t_out, k, C, H)
    t_in_blk = t_out_blk * k
    grid = (B, t_out // t_out_blk)

    flops = 2.0 * B * t_used * C * H + 3.0 * B * t_used * H
    bytes_accessed = (x_bf.size * 2 + w_bf.size * 2 + b.size * 4
                      + B * H * t_out * 4)
    blk_bytes = (2 * (t_in_blk * C * 2 + H * t_out_blk * 4)
                 + C * H * 2 + H * 4 + 2 * t_in_blk * H * 4)
    vmem_limit = int(min(max(4 * blk_bytes, 16 << 20), 48 << 20))

    kernel = functools.partial(_featpool_nonoverlap_kernel, kernel_size=k)
    return pl.pallas_call(
        kernel,
        out_shape=jax.ShapeDtypeStruct((B, H, t_out), jnp.float32),
        grid=grid,
        in_specs=[
            pl.BlockSpec((1, t_in_blk, C), lambda bi, ti: (bi, ti, 0)),
            pl.BlockSpec((C, H), lambda bi, ti: (0, 0)),
            pl.BlockSpec((1, H), lambda bi, ti: (0, 0)),
        ],
        out_specs=pl.BlockSpec((1, H, t_out_blk), lambda bi, ti: (bi, 0, ti)),
        compiler_params=pltpu.CompilerParams(
            dimension_semantics=("parallel", "parallel"),
            vmem_limit_bytes=vmem_limit),
        cost_estimate=pl.CostEstimate(
            flops=int(flops), transcendentals=0,
            bytes_accessed=int(bytes_accessed)),
    )(x_bf, w_bf, b)


def _feat_avg_pool_overlap(x, w, b, k, stride, t_out):
    # TODO(synk): tile the time axis (with halos / k strided-slice adds) for the
    # overlapping-window case instead of full-T blocks + dense pooling matmul.
    B, T, C = x.shape
    H = w.shape[1]
    xf = x.astype(jnp.float32)
    wf = w.astype(jnp.float32)
    rows = jnp.arange(t_out, dtype=jnp.int32)[:, None]
    cols = jnp.arange(T, dtype=jnp.int32)[None, :]
    P = (((cols >= rows * stride) & (cols < rows * stride + k))
         .astype(jnp.float32) / float(k))                  # (T_out, T)

    return pl.pallas_call(
        _featpool_overlap_kernel,
        out_shape=jax.ShapeDtypeStruct((B, H, t_out), jnp.float32),
        grid=(B,),
        in_specs=[
            pl.BlockSpec((1, T, C), lambda bi: (bi, 0, 0)),
            pl.BlockSpec((C, H), lambda bi: (0, 0)),
            pl.BlockSpec((1, H), lambda bi: (0, 0)),
            pl.BlockSpec((t_out, T), lambda bi: (0, 0)),
        ],
        out_specs=pl.BlockSpec((1, H, t_out), lambda bi: (bi, 0, 0)),
        compiler_params=pltpu.CompilerParams(
            dimension_semantics=("parallel",)),
    )(xf, wf, b, P)


def feat_avg_pool(x, conv_weight, conv_bias, kernel_size, stride):
    """x: (B, T, C_in). conv_weight: (H, C_in, 1). conv_bias: (H,).
    Returns (B, H, T_out) float32, matching FeatAvgPool.forward."""
    B, T, C = x.shape
    H = conv_weight.shape[0]
    t_out = (T - kernel_size) // stride + 1
    assert t_out >= 1

    w2 = conv_weight.reshape(H, C).T                       # (C, H)
    b2 = conv_bias.reshape(1, H).astype(jnp.float32)       # (1, H)

    if stride == kernel_size:
        return _feat_avg_pool_nonoverlap(x, w2, b2, kernel_size, t_out)
    return _feat_avg_pool_overlap(x, w2, b2, kernel_size, stride, t_out)


# ------------------------------- test -------------------------------------- #

if __name__ == "__main__":
    key = jax.random.PRNGKey(0)
    kx, kw, kb, kx2 = jax.random.split(key, 4)

    # Primary path: kernel_size == stride (the configuration MMN uses).
    B, T, C_in, H = 2, 16, 32, 32
    kernel_size, stride = 2, 2
    x = jax.random.normal(kx, (B, T, C_in), dtype=jnp.float32)
    conv_weight = 0.1 * jax.random.normal(kw, (H, C_in, 1), dtype=jnp.float32)
    conv_bias = 0.1 * jax.random.normal(kb, (H,), dtype=jnp.float32)

    out = jax.block_until_ready(
        feat_avg_pool(x, conv_weight, conv_bias, kernel_size, stride))

    T_out = (T - kernel_size) // stride + 1
    # Reference built from the same bf16-rounded operands the kernel feeds the MXU.
    x_r = x.astype(jnp.bfloat16).astype(jnp.float32)
    w_r = conv_weight[:, :, 0].astype(jnp.bfloat16).astype(jnp.float32)
    y_r = jnp.einsum("btc,hc->bht", x_r, w_r,
                     precision=jax.lax.Precision.HIGHEST) + conv_bias[None, :, None]
    y_r = jnp.maximum(y_r, 0.0)
    ref = jnp.stack([y_r[:, :, i * stride:i * stride + kernel_size].mean(axis=-1)
                     for i in range(T_out)], axis=-1)
    assert out.shape == (B, H, T_out), out.shape
    assert jnp.allclose(out, ref, atol=1e-3, rtol=1e-3), \
        float(jnp.max(jnp.abs(out - ref)))

    # Fallback path: overlapping windows (stride != kernel_size).
    B2, T2, k2, s2 = 2, 18, 4, 2
    x2 = jax.random.normal(kx2, (B2, T2, C_in), dtype=jnp.float32)
    out2 = jax.block_until_ready(
        feat_avg_pool(x2, conv_weight, conv_bias, k2, s2))
    T_out2 = (T2 - k2) // s2 + 1
    y2 = jnp.einsum("btc,hc->bht", x2, conv_weight[:, :, 0]) + conv_bias[None, :, None]
    y2 = jnp.maximum(y2, 0.0)
    ref2 = jnp.stack([y2[:, :, i * s2:i * s2 + k2].mean(axis=-1)
                      for i in range(T_out2)], axis=-1)
    assert out2.shape == (B2, H, T_out2), out2.shape
    assert jnp.allclose(out2, ref2, atol=1e-4, rtol=1e-4), \
        float(jnp.max(jnp.abs(out2 - ref2)))

    print("KERNEL_OK")
</pallas_src>

<mosaic_0001>
module attributes {stable_mosaic.version = 11 : i64} {
  func.func @_featpool_nonoverlap_kernel(%arg0: i32, %arg1: i32, %arg2: memref<1x16x32xbf16, #tpu.memory_space<vmem>>, %arg3: memref<32x32xbf16, #tpu.memory_space<vmem>>, %arg4: memref<1x32xf32, #tpu.memory_space<vmem>>, %arg5: memref<1x32x8xf32, #tpu.memory_space<vmem>>) attributes {dimension_semantics = [#tpu.dimension_semantics<parallel>, #tpu.dimension_semantics<parallel>], iteration_bounds = array<i64: 2, 1>, scalar_prefetch = 0 : i64, scratch_operands = 0 : i64, tpu.core_type = #tpu.core_type<tc>, window_params = [{transform_indices = @transform_0, window_bounds = array<i64: 1, 16, 32>}, {pipeline_mode = #tpu.pipeline_mode<synchronous>, transform_indices = @transform_1, window_bounds = array<i64: 32, 32>}, {pipeline_mode = #tpu.pipeline_mode<synchronous>, transform_indices = @transform_2, window_bounds = array<i64: 1, 32>}, {transform_indices = @transform_3, window_bounds = array<i64: 1, 32, 8>}]} {
    %c0 = arith.constant 0 : index
    %c0_0 = arith.constant 0 : index
    %c0_1 = arith.constant 0 : index
    %0 = vector.load %arg2[%c0, %c0_0, %c0_1] : memref<1x16x32xbf16, #tpu.memory_space<vmem>>, vector<1x16x32xbf16>
    %1 = vector.shape_cast %0 : vector<1x16x32xbf16> to vector<16x32xbf16>
    %c0_2 = arith.constant 0 : index
    %c0_3 = arith.constant 0 : index
    %2 = vector.load %arg3[%c0_2, %c0_3] : memref<32x32xbf16, #tpu.memory_space<vmem>>, vector<32x32xbf16>
    %cst = arith.constant dense<0.000000e+00> : vector<16x32xf32>
    %3 = tpu.matmul %1, %2, %cst {dimension_numbers = #tpu.dot_dimension_numbers<[1], [0], [0], [1], [0, 0, 1, 1], [], []>} : vector<16x32xbf16>, vector<32x32xbf16>, vector<16x32xf32> -> vector<16x32xf32>
    %c0_4 = arith.constant 0 : index
    %c0_5 = arith.constant 0 : index
    %4 = vector.load %arg4[%c0_4, %c0_5] : memref<1x32xf32, #tpu.memory_space<vmem>>, vector<1x32xf32>
    %5 = vector.broadcast %4 : vector<1x32xf32> to vector<16x32xf32>
    %6 = arith.addf %3, %5 : vector<16x32xf32>
    %cst_6 = arith.constant 0.000000e+00 : f32
    %7 = vector.broadcast %cst_6 : f32 to vector<16x32xf32>
    %8 = arith.maximumf %6, %7 : vector<16x32xf32>
    %9 = vector.shape_cast %8 : vector<16x32xf32> to vector<8x2x32xf32>
    %cst_7 = arith.constant dense<0.000000e+00> : vector<8x32xf32>
    %10 = vector.multi_reduction <add>, %9, %cst_7 [1] : vector<8x2x32xf32> to vector<8x32xf32>
    %cst_8 = arith.constant 2.000000e+00 : f32
    %11 = vector.broadcast %cst_8 : f32 to vector<8x32xf32>
    %12 = arith.divf %10, %11 : vector<8x32xf32>
    %13 = tpu.transpose %12, [1, 0] : vector<8x32xf32> -> vector<32x8xf32>
    %c0_9 = arith.constant 0 : index
    %c0_10 = arith.constant 0 : index
    %c0_11 = arith.constant 0 : index
    %14 = vector.load %arg5[%c0_9, %c0_10, %c0_11] : memref<1x32x8xf32, #tpu.memory_space<vmem>>, vector<1x32x8xf32>
    %15 = vector.shape_cast %14 : vector<1x32x8xf32> to vector<32x8xf32>
    %16 = vector.shape_cast %13 : vector<32x8xf32> to vector<1x32x8xf32>
    tpu.vector_store %arg5[%c0_9, %c0_10, %c0_11], %16 {strides = array<i32>} : memref<1x32x8xf32, #tpu.memory_space<vmem>>, vector<1x32x8xf32>,
    return
  }
  func.func @transform_0(%arg0: i32, %arg1: i32) -> (i32, i32, i32) {
    %c0_i32 = arith.constant 0 : i32
    %c0_i32_0 = arith.constant 0 : i32
    return %arg0, %arg1, %c0_i32 : i32, i32, i32
  }
  func.func @transform_1(%arg0: i32, %arg1: i32) -> (i32, i32) {
    %c0_i32 = arith.constant 0 : i32
    %c0_i32_0 = arith.constant 0 : i32
    %c0_i32_1 = arith.constant 0 : i32
    return %c0_i32, %c0_i32_0 : i32, i32
  }
  func.func @transform_2(%arg0: i32, %arg1: i32) -> (i32, i32) {
    %c0_i32 = arith.constant 0 : i32
    %c0_i32_0 = arith.constant 0 : i32
    %c0_i32_1 = arith.constant 0 : i32
    return %c0_i32, %c0_i32_0 : i32, i32
  }
  func.func @transform_3(%arg0: i32, %arg1: i32) -> (i32, i32, i32) {
    %c0_i32 = arith.constant 0 : i32
    %c0_i32_0 = arith.constant 0 : i32
    return %arg0, %c0_i32, %arg1 : i32, i32, i32
  }
}

</mosaic_0001>

<llo_original>
// kernel: tpu_custom_call.1
$region0: #{tpu_custom_call.1}
  #allocation0 [shape = 'u32[]', space=smem, size = 0x4, offset = 0x4, fixed_abs, tag = 'smem constant byte address 0x4 - core index']
  #allocation1 [shape = 'u32[144,128]{1,0:T(1,128)}', space=vmem, size = 0x12000, scoped, tag = 'internal scratch']
  %s0 = inlined_call_operand.hbm [shape: bf16[2,16,32], index: 0, kind: input, shape index: {}]
  %s1 = inlined_call_operand.hbm [shape: bf16[32,32], index: 1, kind: input, shape index: {}]
  %s2 = inlined_call_operand.vmem [shape: f32[1,32], index: 2, kind: input, shape index: {}]
  %s3 = inlined_call_operand.vmem [shape: f32[2,32,8], index: 3, kind: output, shape index: {}]
  %s4 = sld [smem:[#allocation0]]
  $region53: #{tpu_custom_call.1} parent=0
    _
  %s6 = ssub.s32 1, %s4
  %s7 = scalar_select 0, %s6, %s4
  $region1: #{tpu_custom_call.1} parent=0
    #allocation2 [shape = 'u8[8192]{0}', space=vmem, size = 0x2000, scoped, tag = 'input window, operand 0']
    #allocation3 [shape = 's32[2]{0}', space=sflag, size = 0x8, scoped, tag = 'scoped memory for tpu_custom_call.1']
    #allocation4 [shape = 'u8[8192]{0}', space=vmem, size = 0x2000, scoped, tag = 'input window, operand 1, single buffered']
    #allocation5 [shape = 's32[1]{0}', space=sflag, size = 0x4, scoped, tag = 'scoped memory for tpu_custom_call.1']
    %8 = vsyncpa [#allocation3], 0
    %s9 = scalar_lea.sflag [#allocation3], 1
    %10 = vsyncpa %s9, 0
    %11 = vsyncpa [#allocation5], 0
    loop: start=0, step=1, limit=4
    $region2: #{tpu_custom_call.1} parent=1 // loop_pre_header
      _
    $region3: #{tpu_custom_call.1} parent=1 // loop_header
      %s13 = sphi 0, %s17
      %p14 = scmp.ge.s32.totalorder %s13, 4
      %s20 = sphi 0, %s32
      %s21 = sphi 0, %s28
      %s22 = sphi 0, %s20
      %s23 = sphi 0, %s21
      %s24 = sphi 0, %s22
      %s25 = sphi 0, %s23
      %s37 = sphi 0, %s39
      %s40 = sphi 0, %s37
      %s41 = sphi 0, %s40
      %s57 = sphi 0, %s41
      %s61 = sphi 0, %s61
      %s63 = sphi 0, %s61
      %s64 = sphi 0, %s63
      %s78 = sphi 0, %s64
      %s82 = sphi 0, %s82
      %s84 = sphi 0, %s82
      %s85 = sphi 0, %s84
      %s99 = sphi 0, %s85
      %s107 = sphi 0, %s109
      %s110 = sphi 0, %s107
      %s111 = sphi 0, %s110
      %s127 = sphi 0, %s111
    $region4: #{tpu_custom_call.1} parent=1 // loop_header_branch
      %16 = sbr.rel (%p14) target = $region8
    $region5: #{tpu_custom_call.1} parent=1 // loop_body
      %s18 = ssub.s32 %s13, 1
      %s19 = ssub.s32 %s13, 2
      %s26 = sadd.s32 1, %s21
      %p27 = scmp.ge.s32.totalorder %s26, 1
      %s28 = scalar_select %p27, 0, %s26
      %s29 = sadd.s32 1, %s20
      %s30 = scalar_select %p27, %s29, %s20
      %p31 = scmp.ge.s32.totalorder %s30, 2
      %s32 = scalar_select %p31, 0, %s30
      %s33 = ssub.s32 %s20, %s32
      %s34 = ssub.s32 %s21, %s28
      %s35 = sor.u32 %s33, %s34
      %p36 = scmp.eq.s32.totalorder %s35, 0
      %s38 = sadd.s32 %s37, 1
      %s39 = scalar_select %p36, %s37, %s38
      %p42 = pneg %p36
      %p43 = scmp.eq.s32.totalorder %s13, 1
      %p44 = por %p42, %p43
      %p45 = scmp.ne.s32.totalorder %s37, %s40
      %p46 = scmp.eq.s32.totalorder %s13, 0
      %p47 = por %p45, %p46
      %p48 = scmp.ne.s32.totalorder %s37, %s40
      %p49 = scmp.eq.s32.totalorder %s18, 1
      %p50 = por %p48, %p49
      %p51 = scmp.ne.s32.totalorder %s40, %s41
      %p52 = scmp.eq.s32.totalorder %s18, 0
      %p53 = por %p51, %p52
      %p54 = scmp.ne.s32.totalorder %s40, %s41
      %p55 = scmp.eq.s32.totalorder %s19, 1
      %p56 = por %p54, %p55
      %p58 = scmp.ne.s32.totalorder %s41, %s57
      %p59 = scmp.eq.s32.totalorder %s19, 0
      %p60 = por %p58, %p59
      %s62 = sadd.s32 %s61, 1
      %p65 = scmp.eq.s32.totalorder %s13, 1
      %p66 = scmp.ne.s32.totalorder %s61, %s63
      %p67 = scmp.eq.s32.totalorder %s13, 0
      %p68 = por %p66, %p67
      %p69 = scmp.ne.s32.totalorder %s61, %s63
      %p70 = scmp.eq.s32.totalorder %s18, 1
      %p71 = por %p69, %p70
      %p72 = scmp.ne.s32.totalorder %s63, %s64
      %p73 = scmp.eq.s32.totalorder %s18, 0
      %p74 = por %p72, %p73
      %p75 = scmp.ne.s32.totalorder %s63, %s64
      %p76 = scmp.eq.s32.totalorder %s19, 1
      %p77 = por %p75, %p76
      %p79 = scmp.ne.s32.totalorder %s64, %s78
      %p80 = scmp.eq.s32.totalorder %s19, 0
      %p81 = por %p79, %p80
      %s83 = sadd.s32 %s82, 1
      %p86 = scmp.eq.s32.totalorder %s13, 1
      %p87 = scmp.ne.s32.totalorder %s82, %s84
      %p88 = scmp.eq.s32.totalorder %s13, 0
      %p89 = por %p87, %p88
      %p90 = scmp.ne.s32.totalorder %s82, %s84
      %p91 = scmp.eq.s32.totalorder %s18, 1
      %p92 = por %p90, %p91
      %p93 = scmp.ne.s32.totalorder %s84, %s85
      %p94 = scmp.eq.s32.totalorder %s18, 0
      %p95 = por %p93, %p94
      %p96 = scmp.ne.s32.totalorder %s84, %s85
      %p97 = scmp.eq.s32.totalorder %s19, 1
      %p98 = por %p96, %p97
      %p100 = scmp.ne.s32.totalorder %s85, %s99
      %p101 = scmp.eq.s32.totalorder %s19, 0
      %p102 = por %p100, %p101
      %s103 = ssub.s32 %s20, %s32
      %s104 = ssub.s32 %s21, %s28
      %s105 = sor.u32 %s103, %s104
      %p106 = scmp.eq.s32.totalorder %s105, 0
      %s108 = sadd.s32 %s107, 1
      %s109 = scalar_select %p106, %s107, %s108
      %p112 = pneg %p106
      %p113 = scmp.eq.s32.totalorder %s13, 1
      %p114 = por %p112, %p113
      %p115 = scmp.ne.s32.totalorder %s107, %s110
      %p116 = scmp.eq.s32.totalorder %s13, 0
      %p117 = por %p115, %p116
      %p118 = scmp.ne.s32.totalorder %s107, %s110
      %p119 = scmp.eq.s32.totalorder %s18, 1
      %p120 = por %p118, %p119
      %p121 = scmp.ne.s32.totalorder %s110, %s111
      %p122 = scmp.eq.s32.totalorder %s18, 0
      %p123 = por %p121, %p122
      %p124 = scmp.ne.s32.totalorder %s110, %s111
      %p125 = scmp.eq.s32.totalorder %s19, 1
      %p126 = por %p124, %p125
      %p128 = scmp.ne.s32.totalorder %s111, %s127
      %p129 = scmp.eq.s32.totalorder %s19, 0
      %p130 = por %p128, %p129
      %p131 = scmp.le.s32.totalorder 1, %s13
      %p132 = scmp.lt.s32.totalorder %s13, 3
      %p133 = pnand %p131, %p132
      %p134 = pneg %p133
      // Predicated region
      $region9: #{tpu_custom_call.1} parent=5 // pred_check
        _
      $region10: #{tpu_custom_call.1} parent=5 // pred_check_branch
        %136 = sbr.rel (%p133) target = $region12
      $region11: #{tpu_custom_call.1} parent=5 // pred_region
        %s137 = ssub.s32 %s13, 1
        // Predicated region
        $region13: #{tpu_custom_call.1} parent=11 // pred_check
          %p138 = pneg %p74
        $region14: #{tpu_custom_call.1} parent=11 // pred_check_branch
          %140 = sbr.rel (%p138) target = $region16
        $region15: #{tpu_custom_call.1} parent=11 // pred_region
          %s142 = ssub.s32 256, 256
          %143 = vsyncadd [#allocation5], %s142
          %s144 = sshll.u32 [#allocation4], 4
          %s145 = int_to_ptr.vmem [resolvable:$true] %s144
          %150 = dma.hbm_to_vmem [thread:$0]  %s1, 256, %s145, [#allocation5], 64, 64, 4
        $region16: #{tpu_custom_call.1} parent=11 // pred_fallthru
          _
        // Predicated region
        $region17: #{tpu_custom_call.1} parent=11 // pred_check
          %p151 = pneg %p95
        $region18: #{tpu_custom_call.1} parent=11 // pred_check_branch
          %153 = sbr.rel (%p151) target = $region20
        $region19: #{tpu_custom_call.1} parent=11 // pred_region
          _
        $region20: #{tpu_custom_call.1} parent=11 // pred_fallthru
          _
      $region12: #{tpu_custom_call.1} parent=5 // pred_fallthru
        _
      %p154 = scmp.lt.s32.totalorder %s13, 2
      // Predicated region
      $region21: #{tpu_custom_call.1} parent=5 // pred_check
        %p155 = pneg %p154
      $region22: #{tpu_custom_call.1} parent=5 // pred_check_branch
        %157 = sbr.rel (%p155) target = $region24
      $region23: #{tpu_custom_call.1} parent=5 // pred_region
        // Predicated region
        $region25: #{tpu_custom_call.1} parent=23 // pred_check
          %p158 = pneg %p47
        $region26: #{tpu_custom_call.1} parent=23 // pred_check_branch
          %160 = sbr.rel (%p158) target = $region28
        $region27: #{tpu_custom_call.1} parent=23 // pred_region
          %s161 = sand.u32 %s37, 1
          %s162 = scalar_lea.sflag [#allocation3], %s161
          %s163 = sand.u32 %s37, 1
          %s164 = smul.addr %s163, 8
          %s165 = scalar_lea.vmem [#allocation2], %s164
          %s166 = smul.u32 2, %s21
          %s168 = ssub.s32 128, 128
          %169 = vsyncadd %s162, %s168
          %s170 = smul.addr %s20, 2
          %s171 = sadd.s32 %s166, %s170
          %s172 = smul.addr %s171, 64
          %s173 = scalar_lea.hbm %s0, %s172
          %s174 = sshll.u32 %s165, 4
          %s175 = int_to_ptr.vmem [resolvable:$true] %s174
          %180 = dma.hbm_to_vmem [thread:$0]  %s173, 128, %s175, %s162, 64, 64, 4
        $region28: #{tpu_custom_call.1} parent=23 // pred_fallthru
          _
      $region24: #{tpu_custom_call.1} parent=5 // pred_fallthru
        _
      %p181 = scmp.le.s32.totalorder 1, %s13
      %p182 = scmp.lt.s32.totalorder %s13, 3
      %p183 = pnand %p181, %p182
      %p184 = pneg %p183
      // Predicated region
      $region29: #{tpu_custom_call.1} parent=5 // pred_check
        _
      $region30: #{tpu_custom_call.1} parent=5 // pred_check_branch
        %186 = sbr.rel (%p183) target = $region32
      $region31: #{tpu_custom_call.1} parent=5 // pred_region
        %s187 = ssub.s32 %s13, 1
        %s188 = sand.u32 %s40, 1
        %s189 = scalar_lea.sflag [#allocation3], %s188
        %s190 = sand.u32 %s40, 1
        %s191 = smul.addr %s190, 8
        %s192 = scalar_lea.vmem [#allocation2], %s191
        // Predicated region
        $region33: #{tpu_custom_call.1} parent=31 // pred_check
          %p193 = pneg %p53
        $region34: #{tpu_custom_call.1} parent=31 // pred_check_branch
          %195 = sbr.rel (%p193) target = $region36
        $region35: #{tpu_custom_call.1} parent=31 // pred_region
          %196 = dma.done %s189, 128
        $region36: #{tpu_custom_call.1} parent=31 // pred_fallthru
          _
        // Predicated region
        $region37: #{tpu_custom_call.1} parent=31 // pred_check
          %p197 = pneg %p74
        $region38: #{tpu_custom_call.1} parent=31 // pred_check_branch
          %199 = sbr.rel (%p197) target = $region40
        $region39: #{tpu_custom_call.1} parent=31 // pred_region
          %200 = dma.done [#allocation5], 256
        $region40: #{tpu_custom_call.1} parent=31 // pred_fallthru
          _
        %s201 = sand.u32 %s40, 1
        %s202 = scalar_lea.sflag [#allocation3], %s201
        %s203 = sand.u32 %s40, 1
        %s204 = smul.addr %s203, 8
        %s205 = scalar_lea.vmem [#allocation2], %s204
        %p206 = pneg %p53
        %p207 = pneg %p50
        %p208 = pneg %p74
        %p209 = pneg %p71
        %p210 = pneg %p95
        %p211 = pneg %p92
        %p212 = pneg %p123
        %p213 = pneg %p120
        %p214 = scmp.lt.s32.totalorder %s22, 1
        %s215 = scalar_select %p214, %s22, 1
        %p216 = scmp.lt.s32.totalorder %s23, 0
        %s217 = scalar_select %p216, %s23, 0
        %s218 = smul.addr %s215, 4
        %s219 = sadd.s32 %s217, %s218
        %s220 = smul.addr %s219, 8
        %s221 = scalar_lea.vmem %s3, %s220
        %s222 = smul.u32 2, %s23
        %p223 = scmp.lt.s32.totalorder %s22, 1
        %s224 = scalar_select %p223, %s22, 1
        %p225 = scmp.lt.s32.totalorder %s23, 0
        %s226 = scalar_select %p225, %s23, 0
        %s227 = smul.addr %s224, 4
        %s228 = sadd.s32 %s226, %s227
        %s229 = smul.addr %s228, 8
        %s230 = scalar_lea.vmem %s3, %s229
        %v232 = vld [vmem:[%s192] sm:$0xf]
        %v233 = vld [vmem:[%s192 + $0x4] sm:$0xf]
        %v234 = vld [vmem:[#allocation4] sm:$0xf]
        %v235 = vld [vmem:[#allocation4 + $0x4] sm:$0xf]
        %v236 = vld [vmem:[#allocation4 + $0x8] sm:$0xf]
        %v237 = vld [vmem:[#allocation4 + $0xc] sm:$0xf]
        %v238 = vld [vmem:[%s2] sm:$0x1]
        %v240 = vlaneseq
        %v241 = vshrl.u32 %v240, 7
        %v242 = vsub.s32 0, %v241
        %v243 = vrot.slane %v238, %v242
        %v247 = vunpack.c.l.b16 %v232
        %v248 = vunpack.c.l.b16 %v233
        %v249 = vpack.c.b16 %v248, %v247
        %v254 = vunpack.c.l.b16 %v234
        %v255 = vunpack.c.l.b16 %v235
        %v256 = vunpack.c.l.b16 %v236
        %v257 = vunpack.c.l.b16 %v237
        %v258 = vpack.c.b16 %v255, %v254
        %v259 = vpack.c.b16 %v257, %v256
        %vm262 = vcmask 261120
        %v264 = vsel %vm262, %v249, 0
        %266 = vmatprep.subr.bf16.mxu0 0
        %267 = vmatpush1.bf16.msra.mxu0 0
        %268 = vmatprep.subr.bf16.mxu0 0
        %269 = vmatpush1.bf16.msra.mxu0 0
        %270 = vmatprep.subr.bf16.mxu0 0
        %271 = vmatpush1.bf16.msra.mxu0 0
        %272 = vmatprep.subr.bf16.mxu0 0
        %273 = vmatpush1.bf16.msra.mxu0 0
        %274 = vmatprep.subr.bf16.mxu0 0
        %275 = vmatpush1.bf16.msra.mxu0 0
        %276 = vmatprep.subr.bf16.mxu0 0
        %277 = vmatpush1.bf16.msra.mxu0 0
        %278 = vmatprep.subr.bf16.mxu0 0
        %279 = vmatpush1.bf16.msra.mxu0 %v259
        %280 = vmatprep.subr.bf16.mxu0 0
        %281 = vmatpush1.bf16.msra.mxu0 %v258
        %282 = vmatprep.subr.bf16.mxu0 0
        %283 = vmatpush2.bf16.msra.mxu0 0
        %284 = vmatprep.subr.bf16.mxu0 0
        %285 = vmatpush2.bf16.msra.mxu0 0
        %286 = vmatprep.subr.bf16.mxu0 0
        %287 = vmatpush2.bf16.msra.mxu0 0
        %288 = vmatprep.subr.bf16.mxu0 0
        %289 = vmatpush2.bf16.msra.mxu0 0
        %290 = vmatprep.subr.bf16.mxu0 0
        %291 = vmatpush2.bf16.msra.mxu0 0
        %292 = vmatprep.subr.bf16.mxu0 0
        %293 = vmatpush2.bf16.msra.mxu0 0
        %294 = vmatprep.subr.bf16.mxu0 0
        %295 = vmatpush2.bf16.msra.mxu0 0
        %296 = vmatprep.subr.bf16.mxu0 0
        %297 = vmatpush2.bf16.msra.mxu0 0
        %298 = vmatprep.mubr.bf16.mxu0 0
        %299 = vmatmul.mubr.bf16.gmra.mxu0 %v264
        %v300 = vpop.f32.mrf.mxu0
        %v301 = vadd.f32 %v243, %v300
        %v302 = vpop.f32.mrf.mxu0
        %v303 = vpop.f32.mrf.mxu0
        %v304 = vadd.f32 %v243, %v303
        %v305 = vpop.f32.mrf.mxu0
        %306 = vdwg.mxu0
        %v307 = vmax.f32 %v301, 0.0
        %v308 = vmax.f32 %v304, 0.0
        %v311 = vcombine.high %v307, %v307
        %v313 = vunpack.c.l.s4 1983009808
        %v314 = vunpack.c.0.s8 %v313
        %v315 = vlaneseq
        %v316 = vshrl.u32 %v315, 7
        %v317 = vsub.s32 %v314, %v316
        %v318 = vrot.slane %v307, %v317
        %v320 = vunpack.c.l.s4 1983009808
        %v321 = vunpack.c.0.s8 %v320
        %v322 = vlaneseq
        %v323 = vshrl.u32 %v322, 7
        %v324 = vsub.s32 %v321, %v323
        %v325 = vrot.slane %v311, %v324
        %v326 = vcombine.high %v318, %v318
        %v327 = vcombine.high %v325, %v325
        %v328 = vcombine.high %v308, %v308
        %v330 = vunpack.c.l.s4 1983009808
        %v331 = vunpack.c.0.s8 %v330
        %v332 = vlaneseq
        %v333 = vshrl.u32 %v332, 7
        %v334 = vsub.s32 %v331, %v333
        %v335 = vrot.slane %v308, %v334
        %v337 = vunpack.c.l.s4 1983009808
        %v338 = vunpack.c.0.s8 %v337
        %v339 = vlaneseq
        %v340 = vshrl.u32 %v339, 7
        %v341 = vsub.s32 %v338, %v340
        %v342 = vrot.slane %v328, %v341
        %v343 = vcombine.high %v335, %v335
        %v344 = vcombine.high %v342, %v342
        %vm353 = vcmask 254976
        %v354 = vsel %vm353, %v318, 0.0
        %v355 = vrot.slane %v354, 4
        %v356 = vadd.f32 %v354, %v355
        %v357 = vrot.slane %v356, 2
        %v358 = vadd.f32 %v356, %v357
        %v359 = vrot.slane %v358, 1
        %v360 = vadd.f32 %v358, %v359
        %v361 = vsel %vm353, %v326, 0.0
        %v362 = vrot.slane %v361, 4
        %v363 = vadd.f32 %v361, %v362
        %v364 = vrot.slane %v363, 2
        %v365 = vadd.f32 %v363, %v364
        %v366 = vrot.slane %v365, 1
        %v367 = vadd.f32 %v365, %v366
        %v368 = vsel %vm353, %v325, 0.0
        %v369 = vrot.slane %v368, 4
        %v370 = vadd.f32 %v368, %v369
        %v371 = vrot.slane %v370, 2
        %v372 = vadd.f32 %v370, %v371
        %v373 = vrot.slane %v372, 1
        %v374 = vadd.f32 %v372, %v373
        %v375 = vsel %vm353, %v327, 0.0
        %v376 = vrot.slane %v375, 4
        %v377 = vadd.f32 %v375, %v376
        %v378 = vrot.slane %v377, 2
        %v379 = vadd.f32 %v377, %v378
        %v380 = vrot.slane %v379, 1
        %v381 = vadd.f32 %v379, %v380
        %v382 = vsel %vm353, %v335, 0.0
        %v383 = vrot.slane %v382, 4
        %v384 = vadd.f32 %v382, %v383
        %v385 = vrot.slane %v384, 2
        %v386 = vadd.f32 %v384, %v385
        %v387 = vrot.slane %v386, 1
        %v388 = vadd.f32 %v386, %v387
        %v389 = vsel %vm353, %v343, 0.0
        %v390 = vrot.slane %v389, 4
        %v391 = vadd.f32 %v389, %v390
        %v392 = vrot.slane %v391, 2
        %v393 = vadd.f32 %v391, %v392
        %v394 = vrot.slane %v393, 1
        %v395 = vadd.f32 %v393, %v394
        %v396 = vsel %vm353, %v342, 0.0
        %v397 = vrot.slane %v396, 4
        %v398 = vadd.f32 %v396, %v397
        %v399 = vrot.slane %v398, 2
        %v400 = vadd.f32 %v398, %v399
        %v401 = vrot.slane %v400, 1
        %v402 = vadd.f32 %v400, %v401
        %v403 = vsel %vm353, %v344, 0.0
        %v404 = vrot.slane %v403, 4
        %v405 = vadd.f32 %v403, %v404
        %v406 = vrot.slane %v405, 2
        %v407 = vadd.f32 %v405, %v406
        %v408 = vrot.slane %v407, 1
        %v409 = vadd.f32 %v407, %v408
        %v410 = vrcp.pop 2.0
        %v411 = vmul.f32 %v360, %v410
        %v412 = vmul.f32 %v367, %v410
        %v413 = vmul.f32 %v374, %v410
        %v414 = vmul.f32 %v381, %v410
        %v415 = vmul.f32 %v388, %v410
        %v416 = vmul.f32 %v395, %v410
        %v417 = vmul.f32 %v402, %v410
        %v418 = vmul.f32 %v409, %v410
        %vm427 = vcmask 1041409
        %v428 = vsel %vm427, %v412, %v411
        %vm429 = vcmask 1042434
        %v430 = vsel %vm429, %v413, %v428
        %vm431 = vcmask 1043459
        %v432 = vsel %vm431, %v414, %v430
        %vm433 = vcmask 1044484
        %v434 = vsel %vm433, %v415, %v432
        %vm435 = vcmask 1045509
        %v436 = vsel %vm435, %v416, %v434
        %vm437 = vcmask 1046534
        %v438 = vsel %vm437, %v417, %v436
        %vm439 = vcmask 1047559
        %v440 = vsel %vm439, %v418, %v438
        %442 = vxpose.xlu0.b32.start [1/16] %v440, 128
        %443 = vxpose.xlu0.b32.cont [2/16] 0.0, 128
        %444 = vxpose.xlu0.b32.cont [3/16] 0.0, 128
        %445 = vxpose.xlu0.b32.cont [4/16] 0.0, 128
        %446 = vxpose.xlu0.b32.cont [5/16] 0.0, 128
        %447 = vxpose.xlu0.b32.cont [6/16] 0.0, 128
        %448 = vxpose.xlu0.b32.cont [7/16] 0.0, 128
        %449 = vxpose.xlu0.b32.cont [8/16] 0.0, 128
        %450 = vxpose.xlu0.b32.cont [9/16] 0.0, 128
        %451 = vxpose.xlu0.b32.cont [10/16] 0.0, 128
        %452 = vxpose.xlu0.b32.cont [11/16] 0.0, 128
        %453 = vxpose.xlu0.b32.cont [12/16] 0.0, 128
        %454 = vxpose.xlu0.b32.cont [13/16] 0.0, 128
        %455 = vxpose.xlu0.b32.cont [14/16] 0.0, 128
        %456 = vxpose.xlu0.b32.cont [15/16] 0.0, 128
        %457 = vxpose.xlu0.b32.end [16/16] 0.0, 128
        %v458 = vpop.trf.xlu0
        %v459 = vpop.trf.xlu0
        %v460 = vpop.trf.xlu0
        %v461 = vpop.trf.xlu0
        %v462 = vpop.trf.xlu0
        %v463 = vpop.trf.xlu0
        %v464 = vpop.trf.xlu0
        %v465 = vpop.trf.xlu0
        %v466 = vpop.trf.xlu0
        %v467 = vpop.trf.xlu0
        %v468 = vpop.trf.xlu0
        %v469 = vpop.trf.xlu0
        %v470 = vpop.trf.xlu0
        %v471 = vpop.trf.xlu0
        %v472 = vpop.trf.xlu0
        %v473 = vpop.trf.xlu0
        %vm474 = vcmask 64512
        %475 = vst.msk [vmem:[%s230] sm:$0xff] %vm474, %v458
        %476 = vst.msk [vmem:[%s230 + $0x8] sm:$0xff] %vm474, %v459
        %477 = vst.msk [vmem:[%s230 + $0x10] sm:$0xff] %vm474, %v460
        %478 = vst.msk [vmem:[%s230 + $0x18] sm:$0xff] %vm474, %v461
        %p479 = scmp.lt.s32.totalorder %s22, 1
        %s480 = scalar_select %p479, %s22, 1
        %p481 = scmp.lt.s32.totalorder %s23, 0
        %s482 = scalar_select %p481, %s23, 0
        %s483 = smul.addr %s480, 4
        %s484 = sadd.s32 %s482, %s483
        %s485 = smul.addr %s484, 8
        %s486 = scalar_lea.vmem %s3, %s485
        // Predicated region
        $region41: #{tpu_custom_call.1} parent=31 // pred_check
          %p487 = pneg %p120
        $region42: #{tpu_custom_call.1} parent=31 // pred_check_branch
          %489 = sbr.rel (%p487) target = $region44
        $region43: #{tpu_custom_call.1} parent=31 // pred_region
          _
        $region44: #{tpu_custom_call.1} parent=31 // pred_fallthru
          _
      $region32: #{tpu_custom_call.1} parent=5 // pred_fallthru
        _
      %p490 = scmp.le.s32.totalorder 2, %s13
      // Predicated region
      $region45: #{tpu_custom_call.1} parent=5 // pred_check
        %p491 = pneg %p490
      $region46: #{tpu_custom_call.1} parent=5 // pred_check_branch
        %493 = sbr.rel (%p491) target = $region48
      $region47: #{tpu_custom_call.1} parent=5 // pred_region
        %s494 = ssub.s32 %s13, 2
        // Predicated region
        $region49: #{tpu_custom_call.1} parent=47 // pred_check
          %p495 = pneg %p126
        $region50: #{tpu_custom_call.1} parent=47 // pred_check_branch
          %497 = sbr.rel (%p495) target = $region52
        $region51: #{tpu_custom_call.1} parent=47 // pred_region
          %p498 = scmp.lt.s32.totalorder %s24, 1
          %s499 = scalar_select %p498, %s24, 1
          %p500 = scmp.lt.s32.totalorder %s25, 0
          %s501 = scalar_select %p500, %s25, 0
          %s502 = smul.addr %s499, 4
          %s503 = sadd.s32 %s501, %s502
          %s504 = smul.addr %s503, 8
          %s505 = scalar_lea.vmem %s3, %s504
        $region52: #{tpu_custom_call.1} parent=47 // pred_fallthru
          _
      $region48: #{tpu_custom_call.1} parent=5 // pred_fallthru
        _
    $region6: #{tpu_custom_call.1} parent=1 // loop_footer
      %s17 = sadd.s32 1, %s13
    $region7: #{tpu_custom_call.1} parent=1 // loop_footer_branch
      %12 = sbr.rel target = $region3
    $region8: #{tpu_custom_call.1} parent=1 // loop_exit
      _
    %506 = vsyncpa [#allocation3], 1
    %s507 = scalar_lea.sflag [#allocation3], 1
    %508 = vsyncpa %s507, 1
    %509 = vsyncpa [#allocation5], 1

</llo_original>
